<compile_context>
chip_gen: v7x
topology: tpu7x:2x2x1
jax: 0.10.0
libtpu: 0.0.40
codegen_flags: <defaults>
</compile_context>

<pallas_src>
import functools

import jax
import jax.numpy as jnp
from jax.experimental import pallas as pl
from jax.experimental.pallas import tpu as pltpu


def _layernorm_kernel(x_ref, wb_ref, o_ref, *, eps, chunk_rows, num_chunks):
    """One grid step: LayerNorm over a (block_rows, hidden) tile.

    The tile is processed in `num_chunks` statically-unrolled sub-chunks of
    `chunk_rows` rows so only a sub-chunk's float32 temporaries are live at a
    time (VMEM pressure independent of block_rows).
    """
    wb = wb_ref[...].astype(jnp.float32)          # (2, hidden): row0=w, row1=b
    w = wb[0:1, :]
    b = wb[1:2, :]
    hidden = x_ref.shape[-1]
    inv_h = jnp.float32(1.0 / hidden)
    eps_f = jnp.float32(eps)

    for c in range(num_chunks):                   # static slices -> zero cost
        lo, hi = c * chunk_rows, (c + 1) * chunk_rows
        x = x_ref[lo:hi, :].astype(jnp.float32)
        # Two-pass statistics in f32 (matches fused CUDA kernel numerics).
        mean = jnp.sum(x, axis=-1, keepdims=True) * inv_h
        xc = x - mean
        var = jnp.sum(xc * xc, axis=-1, keepdims=True) * inv_h
        invvar = jax.lax.rsqrt(var + eps_f)
        o_ref[lo:hi, :] = ((xc * invvar) * w + b).astype(o_ref.dtype)


def _tpu_vmem_and_cores():
    """(vmem_capacity_bytes, tensorcores_per_chip, device_kind) with fallbacks."""
    kind = ""
    try:
        kind = jax.devices()[0].device_kind.lower()
    except Exception:
        pass
    cap = None
    try:
        cap = int(pltpu.get_tpu_info().vmem_capacity_bytes)
    except Exception:
        cap = None
    is_v7 = ("v7" in kind) or ("7x" in kind)
    if cap is None or cap <= 0:
        cap = (64 if is_v7 else 128) * 1024 * 1024
    num_tc = 2 if is_v7 else 1
    return cap, num_tc, kind


def _vmem_budget_and_limit(cap_bytes, kind):
    """Tile-working-set budget and scoped-VMEM limit, scaled to the chip."""
    budget = int(0.40 * cap_bytes)
    if "v5" in kind:
        # v5e: slower HBM -> per-step overhead is already small vs DMA time;
        # moderate tiles avoid regalloc/spill pressure from f32 temps.
        budget = min(budget, 24 * 1024 * 1024)
    budget = max(budget, 8 * 1024 * 1024)
    limit = max(int(0.60 * cap_bytes), budget + 12 * 1024 * 1024)
    limit = min(limit, cap_bytes - 4 * 1024 * 1024)
    return budget, limit


def _choose_tiling(rows, hidden, dtype, budget_bytes, num_tc):
    """Pick (block_rows, chunk_rows): large dtype-aligned row tiles under the
    VMEM budget, sub-chunked so f32 temporaries stay small."""
    itemsize = jnp.dtype(dtype).itemsize
    row_align = max(8, 32 // itemsize)            # 8 f32 / 16 bf16 / 32 int8
    rows_padded = pl.cdiv(rows, row_align) * row_align

    # In-kernel sub-chunk (bounds live f32 temps): ~128 rows for f32.
    chunk_rows = max(row_align, min(row_align * 16, rows_padded))
    chunk_rows = (chunk_rows // row_align) * row_align

    # Budget covers the pipelined working set: double-buffered in + out tiles.
    per_row_bytes = hidden * 4 * itemsize
    cand = budget_bytes // max(per_row_bytes, 1)
    cand = max(chunk_rows, min(cand, 32768))
    cand = (cand // chunk_rows) * chunk_rows
    cand = min(cand, pl.cdiv(rows_padded, chunk_rows) * chunk_rows)

    # Dual-TensorCore chips (v7x): keep >= 8 grid steps so "parallel" sharding
    # can load-balance both cores.  Single-TC chips get no forced split.
    # TODO(synk): profile whether ("parallel",) actually shards across v7x TCs;
    # if not, switch to pltpu.CORE_PARALLEL / core_map over a tensorcore mesh.
    if num_tc > 1:
        min_steps = 4 * num_tc
        if rows_padded >= min_steps * chunk_rows:
            per_step = pl.cdiv(rows_padded, min_steps)
            per_step = max(chunk_rows, (per_step // chunk_rows) * chunk_rows)
            cand = min(cand, per_step)

    return cand, chunk_rows


def _build_call(rows, hidden, out_dtype, block_rows, chunk_rows, eps,
                vmem_limit_bytes, cost, single_buffer_wb):
    wb_kwargs = {"pipeline_mode": pl.Buffered(1)} if single_buffer_wb else {}
    wb_spec = pl.BlockSpec((2, hidden), lambda i: (0, 0), **wb_kwargs)
    num_chunks = block_rows // chunk_rows
    return pl.pallas_call(
        functools.partial(_layernorm_kernel, eps=eps,
                          chunk_rows=chunk_rows, num_chunks=num_chunks),
        out_shape=jax.ShapeDtypeStruct((rows, hidden), out_dtype),
        grid_spec=pltpu.PrefetchScalarGridSpec(
            num_scalar_prefetch=0,
            grid=(pl.cdiv(rows, block_rows),),
            in_specs=[
                pl.BlockSpec((block_rows, hidden), lambda i: (i, 0)),
                wb_spec,
            ],
            out_specs=pl.BlockSpec((block_rows, hidden), lambda i: (i, 0)),
        ),
        compiler_params=pltpu.CompilerParams(
            dimension_semantics=("parallel",),
            vmem_limit_bytes=vmem_limit_bytes,
        ),
        cost_estimate=cost,
    )


def mixed_fused_layer_norm(x, weight, bias, normalized_shape, eps=1e-5,
                           apply_layernorm_weight_plus_one=False,
                           block_rows=None):
    """Forward of MixedFusedLayerNorm: x's trailing dims equal normalized_shape."""
    if isinstance(normalized_shape, int):
        normalized_shape = (normalized_shape,)
    normalized_shape = tuple(normalized_shape)

    hidden = 1
    for d in normalized_shape:
        hidden *= d
    lead_shape = x.shape[:x.ndim - len(normalized_shape)]
    rows = 1
    for d in lead_shape:
        rows *= d

    # Flatten to [rows, hidden] (no-op view for contiguous leading dims).
    x2 = x.reshape(rows, hidden)
    w2 = weight.reshape(1, hidden).astype(jnp.float32)
    b2 = bias.reshape(1, hidden).astype(jnp.float32)
    if apply_layernorm_weight_plus_one:
        w2 = w2 + 1.0
    wb = jnp.concatenate([w2, b2], axis=0)        # (2, hidden): one small DMA

    cap, num_tc, kind = _tpu_vmem_and_cores()
    budget, vmem_limit = _vmem_budget_and_limit(cap, kind)

    if block_rows is None:
        block_rows, chunk_rows = _choose_tiling(rows, hidden, x.dtype,
                                                budget, num_tc)
    else:
        chunk_rows = block_rows                   # caller override: one chunk

    itemsize = jnp.dtype(x.dtype).itemsize
    cost = pl.CostEstimate(
        flops=9 * rows * hidden,
        transcendentals=rows,
        bytes_accessed=2 * rows * hidden * itemsize + 2 * hidden * 4,
    )

    call_args = (rows, hidden, x.dtype, block_rows, chunk_rows, eps,
                 vmem_limit, cost)
    try:
        out = _build_call(*call_args, single_buffer_wb=True)(x2, wb)
    except Exception:
        # pipeline_mode=pl.Buffered(1) unsupported on this JAX version: use the
        # (known-good) default double-buffered pipeline for the tiny wb operand.
        out = _build_call(*call_args, single_buffer_wb=False)(x2, wb)

    return out.reshape(x.shape)


if __name__ == "__main__":
    # Module config: normalized_shape = hidden = 32 ; eps = 1e-5
    batch, seq, hidden = 2, 8, 32
    eps = 1e-5

    key = jax.random.PRNGKey(0)
    k1, k2, k3 = jax.random.split(key, 3)
    x = jax.random.normal(k1, (batch, seq, hidden), dtype=jnp.float32)

    # Deterministic parameter init, matching reset_parameters() default path:
    # init.ones_(weight), init.zeros_(bias)
    weight = jnp.ones((hidden,), dtype=jnp.float32)
    bias = jnp.zeros((hidden,), dtype=jnp.float32)

    out = mixed_fused_layer_norm(x, weight, bias, hidden, eps=eps)
    out = jax.block_until_ready(out)

    def ref_ln(xa, wa, ba):
        xf = xa.astype(jnp.float32)
        mean = jnp.mean(xf, axis=-1, keepdims=True)
        var = jnp.mean((xf - mean) ** 2, axis=-1, keepdims=True)
        return ((xf - mean) * jax.lax.rsqrt(var + eps)) * wa + ba

    assert jnp.allclose(out, ref_ln(x, weight, bias).astype(x.dtype),
                        atol=2e-5, rtol=2e-5)

    # Second check: lane-dense hidden (multiple of 128), non-trivial affine,
    # nonzero mean (exercises the two-pass variance path).
    h2 = 256
    x_b = jax.random.normal(k2, (4, 16, h2), dtype=jnp.float32) * 3.0 + 1.5
    w_b = jax.random.normal(k3, (h2,), dtype=jnp.float32) * 0.1 + 1.0
    b_b = jnp.linspace(-1.0, 1.0, h2, dtype=jnp.float32)
    out_b = jax.block_until_ready(
        mixed_fused_layer_norm(x_b, w_b, b_b, (h2,), eps=eps))
    assert jnp.allclose(out_b, ref_ln(x_b, w_b, b_b).astype(x_b.dtype),
                        atol=2e-4, rtol=2e-4)

    print("KERNEL_OK")
</pallas_src>

<mosaic_0001>
module attributes {stable_mosaic.version = 11 : i64} {
  func.func @_layernorm_kernel(%arg0: i32, %arg1: memref<16x32xf32, #tpu.memory_space<vmem>>, %arg2: memref<2x32xf32, #tpu.memory_space<vmem>>, %arg3: memref<16x32xf32, #tpu.memory_space<vmem>>) attributes {dimension_semantics = [#tpu.dimension_semantics<parallel>], iteration_bounds = array<i64: 1>, scalar_prefetch = 0 : i64, scratch_operands = 0 : i64, tpu.core_type = #tpu.core_type<tc>, window_params = [{transform_indices = @transform_0, window_bounds = array<i64: 16, 32>}, {pipeline_mode = #tpu.pipeline_mode<synchronous>, transform_indices = @transform_1, window_bounds = array<i64: 2, 32>}, {transform_indices = @transform_2, window_bounds = array<i64: 16, 32>}]} {
    %c0 = arith.constant 0 : index
    %c0_0 = arith.constant 0 : index
    %0 = vector.load %arg2[%c0, %c0_0] : memref<2x32xf32, #tpu.memory_space<vmem>>, vector<2x32xf32>
    %1 = vector.extract_strided_slice %0 {offsets = [0, 0], sizes = [1, 32], strides = [1, 1]} : vector<2x32xf32> to vector<1x32xf32>
    %2 = vector.extract_strided_slice %0 {offsets = [1, 0], sizes = [1, 32], strides = [1, 1]} : vector<2x32xf32> to vector<1x32xf32>
    %c0_1 = arith.constant 0 : index
    %c0_2 = arith.constant 0 : index
    %3 = vector.load %arg1[%c0_1, %c0_2] : memref<16x32xf32, #tpu.memory_space<vmem>>, vector<16x32xf32>
    %cst = arith.constant dense<0.000000e+00> : vector<16xf32>
    %4 = vector.multi_reduction <add>, %3, %cst [1] : vector<16x32xf32> to vector<16xf32>
    %5 = vector.shape_cast %4 : vector<16xf32> to vector<16x1xf32>
    %cst_3 = arith.constant 3.125000e-02 : f32
    %6 = vector.broadcast %cst_3 : f32 to vector<16x1xf32>
    %7 = arith.mulf %5, %6 : vector<16x1xf32>
    %8 = vector.broadcast %7 : vector<16x1xf32> to vector<16x32xf32>
    %9 = arith.subf %3, %8 : vector<16x32xf32>
    %10 = arith.mulf %9, %9 : vector<16x32xf32>
    %cst_4 = arith.constant dense<0.000000e+00> : vector<16xf32>
    %11 = vector.multi_reduction <add>, %10, %cst_4 [1] : vector<16x32xf32> to vector<16xf32>
    %12 = vector.shape_cast %11 : vector<16xf32> to vector<16x1xf32>
    %cst_5 = arith.constant 3.125000e-02 : f32
    %13 = vector.broadcast %cst_5 : f32 to vector<16x1xf32>
    %14 = arith.mulf %12, %13 : vector<16x1xf32>
    %cst_6 = arith.constant 9.99999974E-6 : f32
    %15 = vector.broadcast %cst_6 : f32 to vector<16x1xf32>
    %16 = arith.addf %14, %15 : vector<16x1xf32>
    %17 = math.rsqrt %16 : vector<16x1xf32>
    %18 = vector.broadcast %17 : vector<16x1xf32> to vector<16x32xf32>
    %19 = arith.mulf %9, %18 : vector<16x32xf32>
    %20 = vector.broadcast %1 : vector<1x32xf32> to vector<16x32xf32>
    %21 = arith.mulf %19, %20 : vector<16x32xf32>
    %22 = vector.broadcast %2 : vector<1x32xf32> to vector<16x32xf32>
    %23 = arith.addf %21, %22 : vector<16x32xf32>
    %c0_7 = arith.constant 0 : index
    %c0_8 = arith.constant 0 : index
    %24 = vector.load %arg3[%c0_7, %c0_8] : memref<16x32xf32, #tpu.memory_space<vmem>>, vector<16x32xf32>
    tpu.vector_store %arg3[%c0_7, %c0_8], %23 {strides = array<i32>} : memref<16x32xf32, #tpu.memory_space<vmem>>, vector<16x32xf32>,
    return
  }
  func.func @transform_0(%arg0: i32) -> (i32, i32) {
    %c0_i32 = arith.constant 0 : i32
    %c0_i32_0 = arith.constant 0 : i32
    return %arg0, %c0_i32 : i32, i32
  }
  func.func @transform_1(%arg0: i32) -> (i32, i32) {
    %c0_i32 = arith.constant 0 : i32
    %c0_i32_0 = arith.constant 0 : i32
    %c0_i32_1 = arith.constant 0 : i32
    return %c0_i32, %c0_i32_0 : i32, i32
  }
  func.func @transform_2(%arg0: i32) -> (i32, i32) {
    %c0_i32 = arith.constant 0 : i32
    %c0_i32_0 = arith.constant 0 : i32
    return %arg0, %c0_i32 : i32, i32
  }
}

module attributes {stable_mosaic.version = 11 : i64} {
  func.func @_layernorm_kernel(%arg0: i32, %arg1: memref<16x32xf32, #tpu.memory_space<vmem>>, %arg2: memref<2x32xf32, #tpu.memory_space<vmem>>, %arg3: memref<16x32xf32, #tpu.memory_space<vmem>>) attributes {dimension_semantics = [#tpu.dimension_semantics<parallel>], iteration_bounds = array<i64: 1>, scalar_prefetch = 0 : i64, scratch_operands = 0 : i64, tpu.core_type = #tpu.core_type<tc>, window_params = [{transform_indices = @transform_0, window_bounds = array<i64: 16, 32>}, {pipeline_mode = #tpu.pipeline_mode<synchronous>, transform_indices = @transform_1, window_bounds = array<i64: 2, 32>}, {transform_indices = @transform_2, window_bounds = array<i64: 16, 32>}]} {
    %c0 = arith.constant 0 : index
    %c0_0 = arith.constant 0 : index
    %0 = vector.load %arg2[%c0, %c0_0] : memref<2x32xf32, #tpu.memory_space<vmem>>, vector<2x32xf32>
    %1 = vector.extract_strided_slice %0 {offsets = [0, 0], sizes = [1, 32], strides = [1, 1]} : vector<2x32xf32> to vector<1x32xf32>
    %2 = vector.extract_strided_slice %0 {offsets = [1, 0], sizes = [1, 32], strides = [1, 1]} : vector<2x32xf32> to vector<1x32xf32>
    %c0_1 = arith.constant 0 : index
    %c0_2 = arith.constant 0 : index
    %3 = vector.load %arg1[%c0_1, %c0_2] : memref<16x32xf32, #tpu.memory_space<vmem>>, vector<16x32xf32>
    %cst = arith.constant dense<0.000000e+00> : vector<16xf32>
    %4 = vector.multi_reduction <add>, %3, %cst [1] : vector<16x32xf32> to vector<16xf32>
    %5 = vector.shape_cast %4 : vector<16xf32> to vector<16x1xf32>
    %cst_3 = arith.constant 3.125000e-02 : f32
    %6 = vector.broadcast %cst_3 : f32 to vector<16x1xf32>
    %7 = arith.mulf %5, %6 : vector<16x1xf32>
    %8 = vector.broadcast %7 : vector<16x1xf32> to vector<16x32xf32>
    %9 = arith.subf %3, %8 : vector<16x32xf32>
    %10 = arith.mulf %9, %9 : vector<16x32xf32>
    %cst_4 = arith.constant dense<0.000000e+00> : vector<16xf32>
    %11 = vector.multi_reduction <add>, %10, %cst_4 [1] : vector<16x32xf32> to vector<16xf32>
    %12 = vector.shape_cast %11 : vector<16xf32> to vector<16x1xf32>
    %cst_5 = arith.constant 3.125000e-02 : f32
    %13 = vector.broadcast %cst_5 : f32 to vector<16x1xf32>
    %14 = arith.mulf %12, %13 : vector<16x1xf32>
    %cst_6 = arith.constant 9.99999974E-6 : f32
    %15 = vector.broadcast %cst_6 : f32 to vector<16x1xf32>
    %16 = arith.addf %14, %15 : vector<16x1xf32>
    %17 = math.rsqrt %16 : vector<16x1xf32>
    %18 = vector.broadcast %17 : vector<16x1xf32> to vector<16x32xf32>
    %19 = arith.mulf %9, %18 : vector<16x32xf32>
    %20 = vector.broadcast %1 : vector<1x32xf32> to vector<16x32xf32>
    %21 = arith.mulf %19, %20 : vector<16x32xf32>
    %22 = vector.broadcast %2 : vector<1x32xf32> to vector<16x32xf32>
    %23 = arith.addf %21, %22 : vector<16x32xf32>
    %c0_7 = arith.constant 0 : index
    %c0_8 = arith.constant 0 : index
    %24 = vector.load %arg3[%c0_7, %c0_8] : memref<16x32xf32, #tpu.memory_space<vmem>>, vector<16x32xf32>
    tpu.vector_store %arg3[%c0_7, %c0_8], %23 {strides = array<i32>} : memref<16x32xf32, #tpu.memory_space<vmem>>, vector<16x32xf32>,
    return
  }
  func.func @transform_0(%arg0: i32) -> (i32, i32) {
    %c0_i32 = arith.constant 0 : i32
    %c0_i32_0 = arith.constant 0 : i32
    return %arg0, %c0_i32 : i32, i32
  }
  func.func @transform_1(%arg0: i32) -> (i32, i32) {
    %c0_i32 = arith.constant 0 : i32
    %c0_i32_0 = arith.constant 0 : i32
    %c0_i32_1 = arith.constant 0 : i32
    return %c0_i32, %c0_i32_0 : i32, i32
  }
  func.func @transform_2(%arg0: i32) -> (i32, i32) {
    %c0_i32 = arith.constant 0 : i32
    %c0_i32_0 = arith.constant 0 : i32
    return %arg0, %c0_i32 : i32, i32
  }
}

</mosaic_0001>

<llo_original>
// kernel: tpu_custom_call.1
$region0: #{tpu_custom_call.1}
  #allocation0 [shape = 'u32[]', space=smem, size = 0x4, offset = 0x4, fixed_abs, tag = 'smem constant byte address 0x4 - core index']
  #allocation1 [shape = 'u32[144,128]{1,0:T(1,128)}', space=vmem, size = 0x12000, scoped, tag = 'internal scratch']
  %s0 = inlined_call_operand.hbm [shape: f32[16,32], index: 0, kind: input, shape index: {}]
  %s1 = inlined_call_operand.hbm [shape: f32[2,32], index: 1, kind: input, shape index: {}]
  %s2 = inlined_call_operand.hbm [shape: f32[16,32], index: 2, kind: output, shape index: {}]
  %s3 = sld [smem:[#allocation0]]
  $region26: #{tpu_custom_call.1} parent=0
    _
  %s5 = ssub.s32 1, %s3
  %s6 = scalar_select 0, %s5, %s3
  $region1: #{tpu_custom_call.1} parent=0
    #allocation2 [shape = 'u8[8192]{0}', space=vmem, size = 0x2000, scoped, tag = 'input window, operand 0, single buffered']
    #allocation3 [shape = 's32[1]{0}', space=sflag, size = 0x4, scoped, tag = 'scoped memory for tpu_custom_call.1']
    #allocation4 [shape = 's32[1]{0}', space=sflag, size = 0x4, scoped, tag = 'scoped memory for tpu_custom_call.1']
    #allocation5 [shape = 'u8[1024]{0}', space=vmem, size = 0x400, scoped, tag = 'input window, operand 1, single buffered']
    #allocation6 [shape = 's32[1]{0}', space=sflag, size = 0x4, scoped, tag = 'scoped memory for tpu_custom_call.1']
    #allocation7 [shape = 'u8[8192]{0}', space=vmem, size = 0x2000, scoped, tag = 'output window, operand 0, single buffered']
    %7 = vsyncpa [#allocation3], 0
    %8 = vsyncpa [#allocation6], 0
    %9 = vsyncpa [#allocation4], 0
    // Predicated region
    $region2: #{tpu_custom_call.1} parent=1 // pred_check
      _
    $region3: #{tpu_custom_call.1} parent=1 // pred_check_branch
      %11 = sbr.rel (0) target = $region5
    $region4: #{tpu_custom_call.1} parent=1 // pred_region
      %s13 = ssub.s32 256, 256
      %14 = vsyncadd [#allocation3], %s13
      %s15 = sshll.u32 [#allocation2], 4
      %s16 = int_to_ptr.vmem [resolvable:$true] %s15
      %21 = dma.hbm_to_vmem [thread:$0]  %s0, 256, %s16, [#allocation3], 128, 128, 8
    $region5: #{tpu_custom_call.1} parent=1 // pred_fallthru
      _
    // Predicated region
    $region6: #{tpu_custom_call.1} parent=1 // pred_check
      _
    $region7: #{tpu_custom_call.1} parent=1 // pred_check_branch
      %23 = sbr.rel (0) target = $region9
    $region8: #{tpu_custom_call.1} parent=1 // pred_region
      %s25 = ssub.s32 32, 32
      %26 = vsyncadd [#allocation6], %s25
      %s28 = sshll.u32 [#allocation5], 4
      %s29 = int_to_ptr.vmem [resolvable:$true] %s28
      %31 = dma.hbm_to_vmem [thread:$0]  %s1, 32, %s29, [#allocation6]
    $region9: #{tpu_custom_call.1} parent=1 // pred_fallthru
      _
    // Predicated region
    $region10: #{tpu_custom_call.1} parent=1 // pred_check
      _
    $region11: #{tpu_custom_call.1} parent=1 // pred_check_branch
      %33 = sbr.rel (0) target = $region13
    $region12: #{tpu_custom_call.1} parent=1 // pred_region
      %34 = dma.done [#allocation3], 256
    $region13: #{tpu_custom_call.1} parent=1 // pred_fallthru
      _
    // Predicated region
    $region14: #{tpu_custom_call.1} parent=1 // pred_check
      _
    $region15: #{tpu_custom_call.1} parent=1 // pred_check_branch
      %36 = sbr.rel (0) target = $region17
    $region16: #{tpu_custom_call.1} parent=1 // pred_region
      %37 = dma.done [#allocation6], 32
    $region17: #{tpu_custom_call.1} parent=1 // pred_fallthru
      _
    %v38 = vld [vmem:[#allocation5] sm:$0x3]
    %v39 = vld [vmem:[#allocation2] sm:$0xff]
    %v40 = vld [vmem:[#allocation2 + $0x8] sm:$0xff]
    %vm41 = vcmask 261120
    %v42 = vsel %vm41, %v39, 0.0
    %43 = vadd.xlane.f32.xlu0 %v42
    %v44 = vpop.xlane.xlu0 %43
    %v45 = vsel %vm41, %v40, 0.0
    %46 = vadd.xlane.f32.xlu0 %v45
    %v47 = vpop.xlane.xlu0 %46
    %v48 = vmul.f32 %v44, 0.03125
    %v49 = vmul.f32 %v47, 0.03125
    %v50 = vsub.f32 %v39, %v48
    %v51 = vsub.f32 %v40, %v49
    %v52 = vmul.f32 %v50, %v50
    %v53 = vmul.f32 %v51, %v51
    %v54 = vsel %vm41, %v52, 0.0
    %55 = vadd.xlane.f32.xlu0 %v54
    %v56 = vpop.xlane.xlu0 %55
    %v57 = vsel %vm41, %v53, 0.0
    %58 = vadd.xlane.f32.xlu0 %v57
    %v59 = vpop.xlane.xlu0 %58
    %v60 = vmul.f32 %v56, 0.03125
    %v61 = vmul.f32 %v59, 0.03125
    %v62 = vadd.f32 %v60, 1e-05
    %v63 = vadd.f32 %v61, 1e-05
    %v64 = vrsqrt.pop %v62
    %v65 = vrsqrt.pop %v63
    %v66 = vmul.f32 %v50, %v64
    %v67 = vmul.f32 %v51, %v65
    %v68 = vlaneseq
    %v69 = vshrl.u32 %v68, 7
    %v70 = vsub.s32 0, %v69
    %v71 = vrot.slane %v38, %v70
    %v72 = vmul.f32 %v66, %v71
    %v73 = vmul.f32 %v67, %v71
    %v74 = vlaneseq
    %v75 = vshrl.u32 %v74, 7
    %v76 = vsub.s32 1, %v75
    %v77 = vrot.slane %v38, %v76
    %v78 = vadd.f32 %v72, %v77
    %v79 = vadd.f32 %v73, %v77
    %80 = vst.msk [vmem:[#allocation7] sm:$0xff] %vm41, %v78
    %81 = vst.msk [vmem:[#allocation7 + $0x8] sm:$0xff] %vm41, %v79
    // Predicated region
    $region18: #{tpu_custom_call.1} parent=1 // pred_check
      _
    $region19: #{tpu_custom_call.1} parent=1 // pred_check_branch
      %83 = sbr.rel (0) target = $region21
    $region20: #{tpu_custom_call.1} parent=1 // pred_region
      %s85 = ssub.s32 256, 256
      %86 = vsyncadd [#allocation4], %s85
      %s87 = sshll.u32 [#allocation7], 4
      %s88 = int_to_ptr.vmem [resolvable:$true] %s87
      %93 = dma.vmem_to_hbm [thread:$0]  %s88, 256, %s2, [#allocation4], 128, 128, 8
    $region21: #{tpu_custom_call.1} parent=1 // pred_fallthru
      _
    // Predicated region
    $region22: #{tpu_custom_call.1} parent=1 // pred_check
      _
    $region23: #{tpu_custom_call.1} parent=1 // pred_check_branch
      %95 = sbr.rel (0) target = $region25
    $region24: #{tpu_custom_call.1} parent=1 // pred_region
      %96 = dma.done [#allocation4], 256
    $region25: #{tpu_custom_call.1} parent=1 // pred_fallthru
      _
    %97 = vsyncpa [#allocation3], 1
    %98 = vsyncpa [#allocation6], 1
    %99 = vsyncpa [#allocation4], 1

// kernel: tpu_custom_call.1
$region0: #{tpu_custom_call.1}
  #allocation0 [shape = 'u32[]', space=smem, size = 0x4, offset = 0x4, fixed_abs, tag = 'smem constant byte address 0x4 - core index']
  #allocation1 [shape = 'u32[144,128]{1,0:T(1,128)}', space=vmem, size = 0x12000, scoped, tag = 'internal scratch']
  %s0 = inlined_call_operand.hbm [shape: f32[16,32], index: 0, kind: input, shape index: {}]
  %s1 = inlined_call_operand.hbm [shape: f32[2,32], index: 1, kind: input, shape index: {}]
  %s2 = inlined_call_operand.hbm [shape: f32[16,32], index: 2, kind: output, shape index: {}]
  %s3 = sld [smem:[#allocation0]]
  $region26: #{tpu_custom_call.1} parent=0
    _
  %s5 = ssub.s32 1, %s3
  %s6 = scalar_select 0, %s5, %s3
  $region1: #{tpu_custom_call.1} parent=0
    #allocation2 [shape = 'u8[8192]{0}', space=vmem, size = 0x2000, scoped, tag = 'input window, operand 0, single buffered']
    #allocation3 [shape = 's32[1]{0}', space=sflag, size = 0x4, scoped, tag = 'scoped memory for tpu_custom_call.1']
    #allocation4 [shape = 's32[1]{0}', space=sflag, size = 0x4, scoped, tag = 'scoped memory for tpu_custom_call.1']
    #allocation5 [shape = 'u8[1024]{0}', space=vmem, size = 0x400, scoped, tag = 'input window, operand 1, single buffered']
    #allocation6 [shape = 's32[1]{0}', space=sflag, size = 0x4, scoped, tag = 'scoped memory for tpu_custom_call.1']
    #allocation7 [shape = 'u8[8192]{0}', space=vmem, size = 0x2000, scoped, tag = 'output window, operand 0, single buffered']
    %7 = vsyncpa [#allocation3], 0
    %8 = vsyncpa [#allocation6], 0
    %9 = vsyncpa [#allocation4], 0
    // Predicated region
    $region2: #{tpu_custom_call.1} parent=1 // pred_check
      _
    $region3: #{tpu_custom_call.1} parent=1 // pred_check_branch
      %11 = sbr.rel (0) target = $region5
    $region4: #{tpu_custom_call.1} parent=1 // pred_region
      %s13 = ssub.s32 256, 256
      %14 = vsyncadd [#allocation3], %s13
      %s15 = sshll.u32 [#allocation2], 4
      %s16 = int_to_ptr.vmem [resolvable:$true] %s15
      %21 = dma.hbm_to_vmem [thread:$0]  %s0, 256, %s16, [#allocation3], 128, 128, 8
    $region5: #{tpu_custom_call.1} parent=1 // pred_fallthru
      _
    // Predicated region
    $region6: #{tpu_custom_call.1} parent=1 // pred_check
      _
    $region7: #{tpu_custom_call.1} parent=1 // pred_check_branch
      %23 = sbr.rel (0) target = $region9
    $region8: #{tpu_custom_call.1} parent=1 // pred_region
      %s25 = ssub.s32 32, 32
      %26 = vsyncadd [#allocation6], %s25
      %s28 = sshll.u32 [#allocation5], 4
      %s29 = int_to_ptr.vmem [resolvable:$true] %s28
      %31 = dma.hbm_to_vmem [thread:$0]  %s1, 32, %s29, [#allocation6]
    $region9: #{tpu_custom_call.1} parent=1 // pred_fallthru
      _
    // Predicated region
    $region10: #{tpu_custom_call.1} parent=1 // pred_check
      _
    $region11: #{tpu_custom_call.1} parent=1 // pred_check_branch
      %33 = sbr.rel (0) target = $region13
    $region12: #{tpu_custom_call.1} parent=1 // pred_region
      %34 = dma.done [#allocation3], 256
    $region13: #{tpu_custom_call.1} parent=1 // pred_fallthru
      _
    // Predicated region
    $region14: #{tpu_custom_call.1} parent=1 // pred_check
      _
    $region15: #{tpu_custom_call.1} parent=1 // pred_check_branch
      %36 = sbr.rel (0) target = $region17
    $region16: #{tpu_custom_call.1} parent=1 // pred_region
      %37 = dma.done [#allocation6], 32
    $region17: #{tpu_custom_call.1} parent=1 // pred_fallthru
      _
    %v38 = vld [vmem:[#allocation5] sm:$0x3]
    %v39 = vld [vmem:[#allocation2] sm:$0xff]
    %v40 = vld [vmem:[#allocation2 + $0x8] sm:$0xff]
    %vm41 = vcmask 261120
    %v42 = vsel %vm41, %v39, 0.0
    %43 = vadd.xlane.f32.xlu0 %v42
    %v44 = vpop.xlane.xlu0 %43
    %v45 = vsel %vm41, %v40, 0.0
    %46 = vadd.xlane.f32.xlu0 %v45
    %v47 = vpop.xlane.xlu0 %46
    %v48 = vmul.f32 %v44, 0.03125
    %v49 = vmul.f32 %v47, 0.03125
    %v50 = vsub.f32 %v39, %v48
    %v51 = vsub.f32 %v40, %v49
    %v52 = vmul.f32 %v50, %v50
    %v53 = vmul.f32 %v51, %v51
    %v54 = vsel %vm41, %v52, 0.0
    %55 = vadd.xlane.f32.xlu0 %v54
    %v56 = vpop.xlane.xlu0 %55
    %v57 = vsel %vm41, %v53, 0.0
    %58 = vadd.xlane.f32.xlu0 %v57
    %v59 = vpop.xlane.xlu0 %58
    %v60 = vmul.f32 %v56, 0.03125
    %v61 = vmul.f32 %v59, 0.03125
    %v62 = vadd.f32 %v60, 1e-05
    %v63 = vadd.f32 %v61, 1e-05
    %v64 = vrsqrt.pop %v62
    %v65 = vrsqrt.pop %v63
    %v66 = vmul.f32 %v50, %v64
    %v67 = vmul.f32 %v51, %v65
    %v68 = vlaneseq
    %v69 = vshrl.u32 %v68, 7
    %v70 = vsub.s32 0, %v69
    %v71 = vrot.slane %v38, %v70
    %v72 = vmul.f32 %v66, %v71
    %v73 = vmul.f32 %v67, %v71
    %v74 = vlaneseq
    %v75 = vshrl.u32 %v74, 7
    %v76 = vsub.s32 1, %v75
    %v77 = vrot.slane %v38, %v76
    %v78 = vadd.f32 %v72, %v77
    %v79 = vadd.f32 %v73, %v77
    %80 = vst.msk [vmem:[#allocation7] sm:$0xff] %vm41, %v78
    %81 = vst.msk [vmem:[#allocation7 + $0x8] sm:$0xff] %vm41, %v79
    // Predicated region
    $region18: #{tpu_custom_call.1} parent=1 // pred_check
      _
    $region19: #{tpu_custom_call.1} parent=1 // pred_check_branch
      %83 = sbr.rel (0) target = $region21
    $region20: #{tpu_custom_call.1} parent=1 // pred_region
      %s85 = ssub.s32 256, 256
      %86 = vsyncadd [#allocation4], %s85
      %s87 = sshll.u32 [#allocation7], 4
      %s88 = int_to_ptr.vmem [resolvable:$true] %s87
      %93 = dma.vmem_to_hbm [thread:$0]  %s88, 256, %s2, [#allocation4], 128, 128, 8
    $region21: #{tpu_custom_call.1} parent=1 // pred_fallthru
      _
    // Predicated region
    $region22: #{tpu_custom_call.1} parent=1 // pred_check
      _
    $region23: #{tpu_custom_call.1} parent=1 // pred_check_branch
      %95 = sbr.rel (0) target = $region25
    $region24: #{tpu_custom_call.1} parent=1 // pred_region
      %96 = dma.done [#allocation4], 256
    $region25: #{tpu_custom_call.1} parent=1 // pred_fallthru
      _
    %97 = vsyncpa [#allocation3], 1
    %98 = vsyncpa [#allocation6], 1
    %99 = vsyncpa [#allocation4], 1

</llo_original>
